<compile_context>
chip_gen: v6e
topology: v6e:2x2x1
jax: 0.10.0
libtpu: 0.0.40
codegen_flags: <defaults>
</compile_context>

<pallas_src>
import functools
import math

import jax
import jax.numpy as jnp
from jax import lax
from jax.experimental import pallas as pl
from jax.experimental.pallas import tpu as pltpu

M_YEARS = 5
FEAT = M_YEARS * 3        # 15
FEAT_PAD = 16             # feature dim padded to a multiple of 8 (zero weight rows)
EMBED = 10                # 6 (country proj) + 4 (athlete contribution)

# ---- packed-parameter layout (64 x 32 f32) ----------------------------------
#   rows  0:16  cols 0:10  W_A  padded to 16 rows, cols 6:10 zero  (country proj)
#   rows 16:32  cols 0:10  W_B  padded to 16 rows, cols 0:6  zero  (athlete proj)
#   rows 32:42  cols 0:30  [Wq^T/sqrt(E) | Wk^T | Wv^T @ Wo^T]     (fused in-proj,
#                                                                   scale + out-proj folded)
#   row  48     cols 0:30  [bq /sqrt(E)  | bk   | bv @ Wo^T]
#   row  49     cols 0:10  bo
#   row  50     cols 0:10  host_effect
PACK_ROWS = 64
PACK_COLS = 32


def _round_up(n, m):
    return (n + m - 1) // m * m


def _medal_kernel(c, host_idx_ref, cfeat_ref, afeat_ref, a2c_ref, pack_ref, out_ref):
    # Static ref slices: free views, no XLU shuffles in the prologue.
    w_a    = pack_ref[0:16, 0:EMBED]          # (16, 10), cols 6:10 are zero
    w_b    = pack_ref[16:32, 0:EMBED]         # (16, 10), cols 0:6  are zero
    wqkv_t = pack_ref[32:42, 0:3 * EMBED]     # (10, 30)
    b_qkv  = pack_ref[48:49, 0:3 * EMBED]     # (1, 30)
    b_o    = pack_ref[49:50, 0:EMBED]         # (1, 10)
    host   = pack_ref[50:51, 0:EMBED]         # (1, 10)

    # --- country / athlete feature projections (two tiny MXU pushes) ---------
    # Padded feature columns / rows multiply zero weight rows -> contribute 0.
    country_proj = jnp.dot(jax.nn.sigmoid(cfeat_ref[...]), w_a,
                           preferred_element_type=jnp.float32)   # (Cp, 10), cols 6:10 == 0
    athlete_proj = jnp.dot(jax.nn.sigmoid(afeat_ref[...]), w_b,
                           preferred_element_type=jnp.float32)   # (Ap, 10), cols 0:6  == 0

    # --- athlete -> country aggregation --------------------------------------
    # a2c is a 0/1 mask shipped AND consumed as bf16 (exact): straight to the
    # MXU with f32 accumulation; padded athlete columns of a2c are zero.
    contrib = jnp.dot(a2c_ref[...], athlete_proj.astype(jnp.bfloat16),
                      preferred_element_type=jnp.float32)        # (Cp, 10), cols 0:6 == 0

    # torch.cat((c@W_A, a2c@(a@W_B)), dim=1): the terms occupy disjoint column
    # ranges, so the concat is a plain add.
    combined = country_proj + contrib

    # --- host-country additive effect (skipped when index == 0, matching the
    #     Python truthiness check in the torch forward) -----------------------
    host_idx = host_idx_ref[0]
    rows = lax.broadcasted_iota(jnp.int32, combined.shape, 0)
    hit = jnp.logical_and(rows == host_idx, host_idx != 0)
    combined = combined + jnp.where(hit, host, 0.0)

    # --- leaky_relu(negative_slope=0.1) ---------------------------------------
    x = jnp.where(combined > 0, combined, 0.1 * combined)        # (Cp, 10)

    # --- single-head self-attention (nn.MultiheadAttention, num_heads=1) ------
    # 1/sqrt(E) already folded into Wq/bq; Wo folded into the V projection.
    qkv = jnp.dot(x, wqkv_t, preferred_element_type=jnp.float32) + b_qkv   # (Cp, 30)
    q = qkv[:, 0:EMBED]
    k = qkv[:, EMBED:2 * EMBED]
    v = qkv[:, 2 * EMBED:3 * EMBED]                  # == (x @ Wv^T + bv) @ Wo^T

    s = lax.dot_general(q, k, (((1,), (1,)), ((), ())),
                        preferred_element_type=jnp.float32)      # (Cp, Cp)
    c_pad = out_ref.shape[0]
    if c != c_pad:  # static: mask padded key rows out of the softmax
        cols = lax.broadcasted_iota(jnp.int32, s.shape, 1)
        s = jnp.where(cols < c, s, -jnp.inf)
    m = jnp.max(s, axis=-1, keepdims=True)
    p = jnp.exp(s - m)
    p = p * pl.reciprocal(jnp.sum(p, axis=-1, keepdims=True), approx=True)

    attn_out = jnp.dot(p, v, preferred_element_type=jnp.float32) + b_o     # (Cp, 10)

    # --- residual + leaky_relu; final 10 -> 1 projection runs in XLA ----------
    y = attn_out + x
    out_ref[...] = jnp.where(y > 0, y, 0.1 * y)


def pack_params(params):
    """Build the (64, 32) parameter pack ONCE; reuse it for every forward call."""
    inv_sqrt_e = 1.0 / math.sqrt(EMBED)
    wo_t = params["Wo"].T
    P = jnp.zeros((PACK_ROWS, PACK_COLS), jnp.float32)
    P = P.at[0:FEAT, 0:6].set(params["W_A"])
    P = P.at[16:16 + FEAT, 6:10].set(params["W_B"])
    P = P.at[32:42, 0:10].set(params["Wq"].T * inv_sqrt_e)     # scale folded in
    P = P.at[32:42, 10:20].set(params["Wk"].T)
    P = P.at[32:42, 20:30].set(params["Wv"].T @ wo_t)          # Wo folded in
    P = P.at[48, 0:10].set(params["bq"] * inv_sqrt_e)
    P = P.at[48, 10:20].set(params["bk"])
    P = P.at[48, 20:30].set(params["bv"] @ wo_t)
    P = P.at[49, 0:10].set(params["bo"])
    P = P.at[50, 0:10].set(params["host_effect"])
    return P


@jax.jit
def medal_forward(pack, final_matrix, country_data, athlete_data,
                  athlete_to_country, host_country_index):
    c = country_data.shape[0]
    a = athlete_data.shape[0]
    c_pad = _round_up(c, 8)
    a_pad = _round_up(a, 8)

    cfeat = jnp.pad(country_data.reshape(c, -1).astype(jnp.float32),
                    ((0, c_pad - c), (0, FEAT_PAD - FEAT)))     # (Cp, 16)
    afeat = jnp.pad(athlete_data.reshape(a, -1).astype(jnp.float32),
                    ((0, a_pad - a), (0, FEAT_PAD - FEAT)))     # (Ap, 16)
    a2c = jnp.pad(athlete_to_country.astype(jnp.bfloat16),      # 0/1 mask: exact in bf16
                  ((0, c_pad - c), (0, a_pad - a)))             # (Cp, Ap)
    host_idx = jnp.asarray(host_country_index, jnp.int32).reshape(1)

    vmem = pl.BlockSpec(memory_space=pltpu.MemorySpace.VMEM)
    smem = pl.BlockSpec(memory_space=pltpu.MemorySpace.SMEM)

    y = pl.pallas_call(
        functools.partial(_medal_kernel, c),
        out_shape=jax.ShapeDtypeStruct((c_pad, EMBED), jnp.float32),
        in_specs=[smem, vmem, vmem, vmem, vmem],
        out_specs=vmem,
    )(host_idx, cfeat, afeat, a2c, pack)

    # Final 10 -> 1 projection in XLA (keeps the kernel store lane-dense-ish and
    # lets the tiny dot fuse under the jit).
    return jnp.dot(y[:c], final_matrix)                         # (C, 1)


def init_params(key):
    ks = jax.random.split(key, 12)
    d = FEAT
    return {
        "W_A": jax.random.normal(ks[0], (d, 6), jnp.float32),
        "W_B": jax.random.normal(ks[1], (d, 4), jnp.float32),
        "host_effect": jax.random.normal(ks[2], (EMBED,), jnp.float32),
        # nn.MultiheadAttention(embed_dim=10, num_heads=1) parameters
        "Wq": jax.random.normal(ks[3], (EMBED, EMBED), jnp.float32) * 0.3,
        "Wk": jax.random.normal(ks[4], (EMBED, EMBED), jnp.float32) * 0.3,
        "Wv": jax.random.normal(ks[5], (EMBED, EMBED), jnp.float32) * 0.3,
        "bq": jax.random.normal(ks[6], (EMBED,), jnp.float32) * 0.1,
        "bk": jax.random.normal(ks[7], (EMBED,), jnp.float32) * 0.1,
        "bv": jax.random.normal(ks[8], (EMBED,), jnp.float32) * 0.1,
        "Wo": jax.random.normal(ks[9], (EMBED, EMBED), jnp.float32) * 0.3,
        "bo": jax.random.normal(ks[10], (EMBED,), jnp.float32) * 0.1,
        "final_matrix": jax.random.normal(ks[11], (EMBED, 1), jnp.float32),
    }


if __name__ == "__main__":
    key = jax.random.PRNGKey(0)
    k_p, k_c, k_a, k_m = jax.random.split(key, 4)

    C, A = 8, 16                                      # countries, athletes
    country_data = jax.random.normal(k_c, (C, M_YEARS, 3), jnp.float32)
    athlete_data = jax.random.normal(k_a, (A, M_YEARS, 3), jnp.float32)
    athlete_to_country = (jax.random.uniform(k_m, (C, A)) > 0.5).astype(jnp.float32)
    host_country_index = 3                            # truthy -> host effect applied

    params = init_params(k_p)
    # Parameter pack is built once (outside the forward) and reused every call.
    pack = jax.block_until_ready(pack_params(params))

    out = medal_forward(pack, params["final_matrix"], country_data, athlete_data,
                        athlete_to_country, host_country_index)
    out = jax.block_until_ready(out)
    assert out.shape == (C, 1)
    print("KERNEL_OK")
</pallas_src>

<mosaic_0001>
module attributes {stable_mosaic.version = 11 : i64} {
  func.func @_medal_kernel(%arg0: memref<1xi32, #tpu.memory_space<smem>>, %arg1: memref<8x16xf32, #tpu.memory_space<vmem>>, %arg2: memref<16x16xf32, #tpu.memory_space<vmem>>, %arg3: memref<8x16xbf16, #tpu.memory_space<vmem>>, %arg4: memref<64x32xf32, #tpu.memory_space<vmem>>, %arg5: memref<8x10xf32, #tpu.memory_space<vmem>>) attributes {dimension_semantics = [], scalar_prefetch = 0 : i64, scratch_operands = 0 : i64, tpu.core_type = #tpu.core_type<tc>} {
    %c0 = arith.constant 0 : index
    %c0_0 = arith.constant 0 : index
    %0 = vector.load %arg4[%c0, %c0_0] : memref<64x32xf32, #tpu.memory_space<vmem>>, vector<16x10xf32>
    %c16 = arith.constant 16 : index
    %c0_1 = arith.constant 0 : index
    %1 = vector.load %arg4[%c16, %c0_1] : memref<64x32xf32, #tpu.memory_space<vmem>>, vector<16x10xf32>
    %c32 = arith.constant 32 : index
    %c0_2 = arith.constant 0 : index
    %2 = vector.load %arg4[%c32, %c0_2] : memref<64x32xf32, #tpu.memory_space<vmem>>, vector<10x30xf32>
    %c48 = arith.constant 48 : index
    %c0_3 = arith.constant 0 : index
    %3 = vector.load %arg4[%c48, %c0_3] : memref<64x32xf32, #tpu.memory_space<vmem>>, vector<1x30xf32>
    %c49 = arith.constant 49 : index
    %c0_4 = arith.constant 0 : index
    %4 = vector.load %arg4[%c49, %c0_4] : memref<64x32xf32, #tpu.memory_space<vmem>>, vector<1x10xf32>
    %c50 = arith.constant 50 : index
    %c0_5 = arith.constant 0 : index
    %5 = vector.load %arg4[%c50, %c0_5] : memref<64x32xf32, #tpu.memory_space<vmem>>, vector<1x10xf32>
    %c0_6 = arith.constant 0 : index
    %c0_7 = arith.constant 0 : index
    %6 = vector.load %arg1[%c0_6, %c0_7] : memref<8x16xf32, #tpu.memory_space<vmem>>, vector<8x16xf32>
    %7 = arith.negf %6 : vector<8x16xf32>
    %8 = math.exp %7 : vector<8x16xf32>
    %cst = arith.constant 1.000000e+00 : f32
    %9 = vector.broadcast %cst : f32 to vector<8x16xf32>
    %10 = arith.addf %9, %8 : vector<8x16xf32>
    %11 = arith.divf %9, %10 : vector<8x16xf32>
    %cst_8 = arith.constant dense<0.000000e+00> : vector<8x10xf32>
    %12 = tpu.matmul %11, %0, %cst_8 {dimension_numbers = #tpu.dot_dimension_numbers<[1], [0], [0], [1], [0, 0, 1, 1], [], []>} : vector<8x16xf32>, vector<16x10xf32>, vector<8x10xf32> -> vector<8x10xf32>
    %c0_9 = arith.constant 0 : index
    %c0_10 = arith.constant 0 : index
    %13 = vector.load %arg2[%c0_9, %c0_10] : memref<16x16xf32, #tpu.memory_space<vmem>>, vector<16x16xf32>
    %14 = arith.negf %13 : vector<16x16xf32>
    %15 = math.exp %14 : vector<16x16xf32>
    %cst_11 = arith.constant 1.000000e+00 : f32
    %16 = vector.broadcast %cst_11 : f32 to vector<16x16xf32>
    %17 = arith.addf %16, %15 : vector<16x16xf32>
    %18 = arith.divf %16, %17 : vector<16x16xf32>
    %cst_12 = arith.constant dense<0.000000e+00> : vector<16x10xf32>
    %19 = tpu.matmul %18, %1, %cst_12 {dimension_numbers = #tpu.dot_dimension_numbers<[1], [0], [0], [1], [0, 0, 1, 1], [], []>} : vector<16x16xf32>, vector<16x10xf32>, vector<16x10xf32> -> vector<16x10xf32>
    %c0_13 = arith.constant 0 : index
    %c0_14 = arith.constant 0 : index
    %20 = vector.load %arg3[%c0_13, %c0_14] : memref<8x16xbf16, #tpu.memory_space<vmem>>, vector<8x16xbf16>
    %21 = arith.truncf %19 : vector<16x10xf32> to vector<16x10xbf16>
    %cst_15 = arith.constant dense<0.000000e+00> : vector<8x10xf32>
    %22 = tpu.matmul %20, %21, %cst_15 {dimension_numbers = #tpu.dot_dimension_numbers<[1], [0], [0], [1], [0, 0, 1, 1], [], []>} : vector<8x16xbf16>, vector<16x10xbf16>, vector<8x10xf32> -> vector<8x10xf32>
    %23 = arith.addf %12, %22 : vector<8x10xf32>
    %c0_16 = arith.constant 0 : index
    %24 = memref.load %arg0[%c0_16] : memref<1xi32, #tpu.memory_space<smem>>
    %25 = tpu.iota {dimensions = array<i32: 0>} : vector<8x10xi32>
    %26 = vector.broadcast %24 : i32 to vector<8x10xi32>
    %27 = arith.cmpi eq, %25, %26 : vector<8x10xi32>
    %c0_i32 = arith.constant 0 : i32
    %28 = arith.cmpi ne, %24, %c0_i32 : i32
    %29 = vector.broadcast %28 : i1 to vector<8x10xi1>
    %30 = arith.andi %27, %29 : vector<8x10xi1>
    %cst_17 = arith.constant 0.000000e+00 : f32
    %31 = vector.shape_cast %5 : vector<1x10xf32> to vector<1x10xf32>
    %32 = vector.broadcast %31 : vector<1x10xf32> to vector<8x10xf32>
    %33 = vector.broadcast %cst_17 : f32 to vector<8x10xf32>
    %34 = arith.select %30, %32, %33 : vector<8x10xi1>, vector<8x10xf32>
    %35 = arith.addf %23, %34 : vector<8x10xf32>
    %cst_18 = arith.constant 0.000000e+00 : f32
    %36 = vector.broadcast %cst_18 : f32 to vector<8x10xf32>
    %37 = arith.cmpf ogt, %35, %36 : vector<8x10xf32>
    %cst_19 = arith.constant 1.000000e-01 : f32
    %38 = vector.broadcast %cst_19 : f32 to vector<8x10xf32>
    %39 = arith.mulf %38, %35 : vector<8x10xf32>
    %40 = arith.select %37, %35, %39 : vector<8x10xi1>, vector<8x10xf32>
    %cst_20 = arith.constant dense<0.000000e+00> : vector<8x30xf32>
    %41 = tpu.matmul %40, %2, %cst_20 {dimension_numbers = #tpu.dot_dimension_numbers<[1], [0], [0], [1], [0, 0, 1, 1], [], []>} : vector<8x10xf32>, vector<10x30xf32>, vector<8x30xf32> -> vector<8x30xf32>
    %42 = vector.broadcast %3 : vector<1x30xf32> to vector<8x30xf32>
    %43 = arith.addf %41, %42 : vector<8x30xf32>
    %44 = vector.extract_strided_slice %43 {offsets = [0, 0], sizes = [8, 10], strides = [1, 1]} : vector<8x30xf32> to vector<8x10xf32>
    %45 = vector.extract_strided_slice %43 {offsets = [0, 10], sizes = [8, 10], strides = [1, 1]} : vector<8x30xf32> to vector<8x10xf32>
    %46 = vector.extract_strided_slice %43 {offsets = [0, 20], sizes = [8, 10], strides = [1, 1]} : vector<8x30xf32> to vector<8x10xf32>
    %cst_21 = arith.constant dense<0.000000e+00> : vector<8x8xf32>
    %47 = tpu.matmul %44, %45, %cst_21 {dimension_numbers = #tpu.dot_dimension_numbers<[1], [1], [0], [0], [0, 0, 1, 0], [], []>} : vector<8x10xf32>, vector<8x10xf32>, vector<8x8xf32> -> vector<8x8xf32>
    %cst_22 = arith.constant dense<0xFF800000> : vector<8xf32>
    %48 = vector.multi_reduction <maximumf>, %47, %cst_22 [1] : vector<8x8xf32> to vector<8xf32>
    %49 = vector.shape_cast %48 : vector<8xf32> to vector<8x1xf32>
    %50 = vector.broadcast %49 : vector<8x1xf32> to vector<8x8xf32>
    %51 = arith.subf %47, %50 : vector<8x8xf32>
    %52 = math.exp %51 : vector<8x8xf32>
    %cst_23 = arith.constant dense<0.000000e+00> : vector<8xf32>
    %53 = vector.multi_reduction <add>, %52, %cst_23 [1] : vector<8x8xf32> to vector<8xf32>
    %54 = vector.shape_cast %53 : vector<8xf32> to vector<8x1xf32>
    %55 = tpu.reciprocal %54 {approx = true} : vector<8x1xf32> -> vector<8x1xf32>
    %56 = vector.broadcast %55 : vector<8x1xf32> to vector<8x8xf32>
    %57 = arith.mulf %52, %56 : vector<8x8xf32>
    %cst_24 = arith.constant dense<0.000000e+00> : vector<8x10xf32>
    %58 = tpu.matmul %57, %46, %cst_24 {dimension_numbers = #tpu.dot_dimension_numbers<[1], [0], [0], [1], [0, 0, 1, 1], [], []>} : vector<8x8xf32>, vector<8x10xf32>, vector<8x10xf32> -> vector<8x10xf32>
    %59 = vector.broadcast %4 : vector<1x10xf32> to vector<8x10xf32>
    %60 = arith.addf %58, %59 : vector<8x10xf32>
    %61 = arith.addf %60, %40 : vector<8x10xf32>
    %cst_25 = arith.constant 0.000000e+00 : f32
    %62 = vector.broadcast %cst_25 : f32 to vector<8x10xf32>
    %63 = arith.cmpf ogt, %61, %62 : vector<8x10xf32>
    %cst_26 = arith.constant 1.000000e-01 : f32
    %64 = vector.broadcast %cst_26 : f32 to vector<8x10xf32>
    %65 = arith.mulf %64, %61 : vector<8x10xf32>
    %66 = arith.select %63, %61, %65 : vector<8x10xi1>, vector<8x10xf32>
    %c0_27 = arith.constant 0 : index
    %c0_28 = arith.constant 0 : index
    %67 = vector.load %arg5[%c0_27, %c0_28] : memref<8x10xf32, #tpu.memory_space<vmem>>, vector<8x10xf32>
    tpu.vector_store %arg5[%c0_27, %c0_28], %66 {strides = array<i32>} : memref<8x10xf32, #tpu.memory_space<vmem>>, vector<8x10xf32>,
    return
  }
}

</mosaic_0001>

<llo_original>
// kernel: medal_forward.1
$region0: #{medal_forward.1}
  #allocation0 [shape = 'u32[]', space=smem, size = 0x4, offset = 0x4, fixed_abs, tag = 'smem constant byte address 0x4 - core index']
  #allocation1 [shape = 'u32[144,128]{1,0:T(1,128)}', space=vmem, size = 0x12000, scoped, tag = 'internal scratch']
  #allocation2 [shape = 's32[1]{0:T(128)S(6)}', space=smem, size = 0x200, scoped, tag = 'scoped memory for medal_forward.1']
  %s0 = inlined_call_operand.<no memory space> [shape: s32[1], index: 0, kind: input, shape index: {}]
  %s1 = inlined_call_operand.vmem [shape: f32[8,16], index: 1, kind: input, shape index: {}]
  %s2 = inlined_call_operand.vmem [shape: f32[16,16], index: 2, kind: input, shape index: {}]
  %s3 = inlined_call_operand.vmem [shape: bf16[8,16], index: 3, kind: input, shape index: {}]
  %s4 = inlined_call_operand.vmem [shape: f32[64,32], index: 4, kind: input, shape index: {}]
  %s5 = inlined_call_operand.vmem [shape: f32[8,10], index: 5, kind: output, shape index: {}]
  %s6 = sld [smem:[#allocation0]]
  $region30: #{medal_forward.1} parent=0
    _
  %s8 = ssub.s32 1, %s6
  %s9 = scalar_select 0, %s8, %s6
  %10 = sst [smem:[#allocation2]] %s0
  // Predicated region
  $region2: #{medal_forward.1} parent=0 // pred_check
    _
  $region3: #{medal_forward.1} parent=0 // pred_check_branch
    %12 = sbr.rel (0) target = $region5
  $region4: #{medal_forward.1} parent=0 // pred_region
    _
  $region5: #{medal_forward.1} parent=0 // pred_fallthru
    _
  // Predicated region
  $region6: #{medal_forward.1} parent=0 // pred_check
    _
  $region7: #{medal_forward.1} parent=0 // pred_check_branch
    %14 = sbr.rel (0) target = $region9
  $region8: #{medal_forward.1} parent=0 // pred_region
    _
  $region9: #{medal_forward.1} parent=0 // pred_fallthru
    _
  // Predicated region
  $region10: #{medal_forward.1} parent=0 // pred_check
    _
  $region11: #{medal_forward.1} parent=0 // pred_check_branch
    %16 = sbr.rel (0) target = $region13
  $region12: #{medal_forward.1} parent=0 // pred_region
    _
  $region13: #{medal_forward.1} parent=0 // pred_fallthru
    _
  // Predicated region
  $region14: #{medal_forward.1} parent=0 // pred_check
    _
  $region15: #{medal_forward.1} parent=0 // pred_check_branch
    %18 = sbr.rel (0) target = $region17
  $region16: #{medal_forward.1} parent=0 // pred_region
    _
  $region17: #{medal_forward.1} parent=0 // pred_fallthru
    _
  // Predicated region
  $region18: #{medal_forward.1} parent=0 // pred_check
    _
  $region19: #{medal_forward.1} parent=0 // pred_check_branch
    %20 = sbr.rel (0) target = $region21
  $region20: #{medal_forward.1} parent=0 // pred_region
    _
  $region21: #{medal_forward.1} parent=0 // pred_fallthru
    _
  %v22 = vld [vmem:[%s4] sm:$0xff]
  %v23 = vld [vmem:[%s4 + $0x8] sm:$0xff]
  %v24 = vld [vmem:[%s4 + $0x10] sm:$0xff]
  %v25 = vld [vmem:[%s4 + $0x18] sm:$0xff]
  %v26 = vld [vmem:[%s4 + $0x20] sm:$0xff]
  %v27 = vld [vmem:[%s4 + $0x28] sm:$0x3]
  %v28 = vld [vmem:[%s4 + $0x30] sm:$0x1]
  %v29 = vld [vmem:[%s4 + $0x31] sm:$0x1]
  %v30 = vld [vmem:[%s4 + $0x32] sm:$0x1]
  %v31 = vld [vmem:[%s1] sm:$0xff]
  %v32 = vxor.u32 %v31, 2147483648
  %v33 = vmul.f32 %v32, 1.442695
  %v34 = vpow.pop %v33
  %v35 = vadd.f32 %v34, 1.0
  %v36 = vrcp.pop %v35
  %v37 = vmul.f32 1.0, %v36
  %v38 = vld [vmem:[%s2] sm:$0xff]
  %v39 = vld [vmem:[%s2 + $0x8] sm:$0xff]
  %v40 = vxor.u32 %v38, 2147483648
  %v41 = vxor.u32 %v39, 2147483648
  %v42 = vmul.f32 %v40, 1.442695
  %v43 = vpow.pop %v42
  %v44 = vmul.f32 %v41, 1.442695
  %v45 = vpow.pop %v44
  %v46 = vadd.f32 %v43, 1.0
  %v47 = vadd.f32 %v45, 1.0
  %v48 = vrcp.pop %v46
  %v49 = vmul.f32 1.0, %v48
  %v50 = vrcp.pop %v47
  %v51 = vmul.f32 1.0, %v50
  %vm52 = vcmask 130048
  %v54 = vsel %vm52, %v49, 0
  %v57 = vsel %vm52, %v51, 0
  %59 = vmatprep.subr.mxu0 0.0
  %60 = vmatpush1.msra.mxu0 0.0
  %61 = vmatprep.subr.mxu0 0.0
  %62 = vmatpush1.msra.mxu0 0.0
  %63 = vmatprep.subr.mxu0 0.0
  %64 = vmatpush1.msra.mxu0 0.0
  %65 = vmatprep.subr.mxu0 0.0
  %66 = vmatpush1.msra.mxu0 0.0
  %67 = vmatprep.subr.mxu0 0.0
  %68 = vmatpush1.msra.mxu0 0.0
  %69 = vmatprep.subr.mxu0 0.0
  %70 = vmatpush1.msra.mxu0 0.0
  %71 = vmatprep.subr.mxu0 0.0
  %72 = vmatpush1.msra.mxu0 0.0
  %73 = vmatprep.subr.mxu0 0.0
  %74 = vmatpush1.msra.mxu0 0.0
  %75 = vmatprep.subr.mxu0 0.0
  %76 = vmatpush1.msra.mxu0 0.0
  %77 = vmatprep.subr.mxu0 0.0
  %78 = vmatpush1.msra.mxu0 0.0
  %79 = vmatprep.subr.mxu0 0.0
  %80 = vmatpush1.msra.mxu0 0.0
  %81 = vmatprep.subr.mxu0 0.0
  %82 = vmatpush1.msra.mxu0 0.0
  %83 = vmatprep.subr.mxu0 0.0
  %84 = vmatpush1.msra.mxu0 0.0
  %85 = vmatprep.subr.mxu0 0.0
  %86 = vmatpush1.msra.mxu0 0.0
  %87 = vmatprep.subr.mxu0 0.0
  %88 = vmatpush1.msra.mxu0 %v25
  %89 = vmatprep.subr.mxu0 0.0
  %90 = vmatpush1.msra.mxu0 %v24
  %91 = vmatprep.subr.mxu0 0.0
  %92 = vmatpush2.msra.mxu0 0.0
  %93 = vmatprep.subr.mxu0 0.0
  %94 = vmatpush2.msra.mxu0 0.0
  %95 = vmatprep.subr.mxu0 0.0
  %96 = vmatpush2.msra.mxu0 0.0
  %97 = vmatprep.subr.mxu0 0.0
  %98 = vmatpush2.msra.mxu0 0.0
  %99 = vmatprep.subr.mxu0 0.0
  %100 = vmatpush2.msra.mxu0 0.0
  %101 = vmatprep.subr.mxu0 0.0
  %102 = vmatpush2.msra.mxu0 0.0
  %103 = vmatprep.subr.mxu0 0.0
  %104 = vmatpush2.msra.mxu0 0.0
  %105 = vmatprep.subr.mxu0 0.0
  %106 = vmatpush2.msra.mxu0 0.0
  %107 = vmatprep.subr.mxu0 0.0
  %108 = vmatpush2.msra.mxu0 0.0
  %109 = vmatprep.subr.mxu0 0.0
  %110 = vmatpush2.msra.mxu0 0.0
  %111 = vmatprep.subr.mxu0 0.0
  %112 = vmatpush2.msra.mxu0 0.0
  %113 = vmatprep.subr.mxu0 0.0
  %114 = vmatpush2.msra.mxu0 0.0
  %115 = vmatprep.subr.mxu0 0.0
  %116 = vmatpush2.msra.mxu0 0.0
  %117 = vmatprep.subr.mxu0 0.0
  %118 = vmatpush2.msra.mxu0 0.0
  %119 = vmatprep.subr.mxu0 0.0
  %120 = vmatpush2.msra.mxu0 0.0
  %121 = vmatprep.subr.mxu0 0.0
  %122 = vmatpush2.msra.mxu0 0.0
  %123 = vmatprep.mubr.f32.mxu0 0.0
  %124 = vmatmul.mubr.f32.gmra.mxu0 %v54
  %v125 = vpop.f32.mrf.mxu0
  %v126 = vadd.f32 0.0, %v125
  %v127 = vpop.f32.mrf.mxu0
  %128 = vmatprep.mubr.f32.mxu0 0.0
  %129 = vmatmul.mubr.f32.gmra.mxu0 %v57
  %v130 = vpop.f32.mrf.mxu0
  %v131 = vadd.f32 0.0, %v130
  %v132 = vpop.f32.mrf.mxu0
  %133 = vdwg.mxu0
  %v134 = vld [vmem:[%s3] sm:$0xf]
  %v135 = vpack.c.bf16 %v131, %v126
  %v137 = vsel %vm52, %v134, 0
  %139 = vmatprep.subr.bf16.mxu0 0
  %140 = vmatpush1.bf16.msra.mxu0 0
  %141 = vmatprep.subr.bf16.mxu0 0
  %142 = vmatpush1.bf16.msra.mxu0 0
  %143 = vmatprep.subr.bf16.mxu0 0
  %144 = vmatpush1.bf16.msra.mxu0 0
  %145 = vmatprep.subr.bf16.mxu0 0
  %146 = vmatpush1.bf16.msra.mxu0 0
  %147 = vmatprep.subr.bf16.mxu0 0
  %148 = vmatpush1.bf16.msra.mxu0 0
  %149 = vmatprep.subr.bf16.mxu0 0
  %150 = vmatpush1.bf16.msra.mxu0 0
  %151 = vmatprep.subr.bf16.mxu0 0
  %152 = vmatpush1.bf16.msra.mxu0 0
  %153 = vmatprep.subr.bf16.mxu0 0
  %154 = vmatpush1.bf16.msra.mxu0 %v135
  %155 = vmatprep.subr.bf16.mxu0 0
  %156 = vmatpush2.bf16.msra.mxu0 0
  %157 = vmatprep.subr.bf16.mxu0 0
  %158 = vmatpush2.bf16.msra.mxu0 0
  %159 = vmatprep.subr.bf16.mxu0 0
  %160 = vmatpush2.bf16.msra.mxu0 0
  %161 = vmatprep.subr.bf16.mxu0 0
  %162 = vmatpush2.bf16.msra.mxu0 0
  %163 = vmatprep.subr.bf16.mxu0 0
  %164 = vmatpush2.bf16.msra.mxu0 0
  %165 = vmatprep.subr.bf16.mxu0 0
  %166 = vmatpush2.bf16.msra.mxu0 0
  %167 = vmatprep.subr.bf16.mxu0 0
  %168 = vmatpush2.bf16.msra.mxu0 0
  %169 = vmatprep.subr.bf16.mxu0 0
  %170 = vmatpush2.bf16.msra.mxu0 0
  %171 = vmatprep.mubr.bf16.mxu0 0
  %172 = vmatmul.mubr.bf16.gmra.mxu0 %v137
  %v173 = vpop.f32.mrf.mxu0
  %v174 = vadd.f32 0.0, %v173
  %v175 = vpop.f32.mrf.mxu0
  %v176 = vpop.f32.mrf.mxu0
  %v177 = vpop.f32.mrf.mxu0
  %178 = vdwg.mxu0
  %v180 = vsel %vm52, %v37, 0
  %182 = vmatprep.subr.mxu0 0.0
  %183 = vmatpush1.msra.mxu0 0.0
  %184 = vmatprep.subr.mxu0 0.0
  %185 = vmatpush1.msra.mxu0 0.0
  %186 = vmatprep.subr.mxu0 0.0
  %187 = vmatpush1.msra.mxu0 0.0
  %188 = vmatprep.subr.mxu0 0.0
  %189 = vmatpush1.msra.mxu0 0.0
  %190 = vmatprep.subr.mxu0 0.0
  %191 = vmatpush1.msra.mxu0 0.0
  %192 = vmatprep.subr.mxu0 0.0
  %193 = vmatpush1.msra.mxu0 0.0
  %194 = vmatprep.subr.mxu0 0.0
  %195 = vmatpush1.msra.mxu0 0.0
  %196 = vmatprep.subr.mxu0 0.0
  %197 = vmatpush1.msra.mxu0 0.0
  %198 = vmatprep.subr.mxu0 0.0
  %199 = vmatpush1.msra.mxu0 0.0
  %200 = vmatprep.subr.mxu0 0.0
  %201 = vmatpush1.msra.mxu0 0.0
  %202 = vmatprep.subr.mxu0 0.0
  %203 = vmatpush1.msra.mxu0 0.0
  %204 = vmatprep.subr.mxu0 0.0
  %205 = vmatpush1.msra.mxu0 0.0
  %206 = vmatprep.subr.mxu0 0.0
  %207 = vmatpush1.msra.mxu0 0.0
  %208 = vmatprep.subr.mxu0 0.0
  %209 = vmatpush1.msra.mxu0 0.0
  %210 = vmatprep.subr.mxu0 0.0
  %211 = vmatpush1.msra.mxu0 %v23
  %212 = vmatprep.subr.mxu0 0.0
  %213 = vmatpush1.msra.mxu0 %v22
  %214 = vmatprep.subr.mxu0 0.0
  %215 = vmatpush2.msra.mxu0 0.0
  %216 = vmatprep.subr.mxu0 0.0
  %217 = vmatpush2.msra.mxu0 0.0
  %218 = vmatprep.subr.mxu0 0.0
  %219 = vmatpush2.msra.mxu0 0.0
  %220 = vmatprep.subr.mxu0 0.0
  %221 = vmatpush2.msra.mxu0 0.0
  %222 = vmatprep.subr.mxu0 0.0
  %223 = vmatpush2.msra.mxu0 0.0
  %224 = vmatprep.subr.mxu0 0.0
  %225 = vmatpush2.msra.mxu0 0.0
  %226 = vmatprep.subr.mxu0 0.0
  %227 = vmatpush2.msra.mxu0 0.0
  %228 = vmatprep.subr.mxu0 0.0
  %229 = vmatpush2.msra.mxu0 0.0
  %230 = vmatprep.subr.mxu0 0.0
  %231 = vmatpush2.msra.mxu0 0.0
  %232 = vmatprep.subr.mxu0 0.0
  %233 = vmatpush2.msra.mxu0 0.0
  %234 = vmatprep.subr.mxu0 0.0
  %235 = vmatpush2.msra.mxu0 0.0
  %236 = vmatprep.subr.mxu0 0.0
  %237 = vmatpush2.msra.mxu0 0.0
  %238 = vmatprep.subr.mxu0 0.0
  %239 = vmatpush2.msra.mxu0 0.0
  %240 = vmatprep.subr.mxu0 0.0
  %241 = vmatpush2.msra.mxu0 0.0
  %242 = vmatprep.subr.mxu0 0.0
  %243 = vmatpush2.msra.mxu0 0.0
  %244 = vmatprep.subr.mxu0 0.0
  %245 = vmatpush2.msra.mxu0 0.0
  %246 = vmatprep.mubr.f32.mxu0 0.0
  %247 = vmatmul.mubr.f32.gmra.mxu0 %v180
  %v248 = vpop.f32.mrf.mxu0
  %v249 = vadd.f32 %v174, %v248
  %v250 = vpop.f32.mrf.mxu0
  %251 = vdwg.mxu0
  %s252 = sld [smem:[#allocation2]]
  %v253 = vlaneseq
  %v254 = vshrl.u32 %v253, 7
  %v255 = vstv %s252
  %vm256 = vcmp.eq.s32.totalorder %v254, %v255
  %p257 = scmp.ne.s32.totalorder %s252, 0
  %s258 = scalar_select %p257, 1, 0
  %v259 = vstv %s258
  %vm260 = vcmp.eq.s32.totalorder %v259, 1
  %vm261 = vmand %vm256, %vm260
  %v262 = vlaneseq
  %v263 = vshrl.u32 %v262, 7
  %v264 = vsub.s32 0, %v263
  %v265 = vrot.slane %v30, %v264
  %v266 = vsel %vm261, %v265, 0.0
  %v267 = vadd.f32 %v249, %v266
  %vm268 = vcmp.gt.f32.partialorder %v267, 0.0
  %v269 = vmul.f32 %v267, 0.1
  %v270 = vsel %vm268, %v267, %v269
  %v271 = vlaneseq
  %v272 = vshrl.u32 %v271, 7
  %v273 = vsub.s32 0, %v272
  %v274 = vrot.slane %v28, %v273
  %vm275 = vcmask 80896
  %v277 = vsel %vm275, %v270, 0
  %vm279 = vcmask 1041408
  %v281 = vsel %vm279, %v27, 0
  %283 = vmatprep.subr.mxu0 0.0
  %284 = vmatpush1.msra.mxu0 0.0
  %285 = vmatprep.subr.mxu0 0.0
  %286 = vmatpush1.msra.mxu0 0.0
  %287 = vmatprep.subr.mxu0 0.0
  %288 = vmatpush1.msra.mxu0 0.0
  %289 = vmatprep.subr.mxu0 0.0
  %290 = vmatpush1.msra.mxu0 0.0
  %291 = vmatprep.subr.mxu0 0.0
  %292 = vmatpush1.msra.mxu0 0.0
  %293 = vmatprep.subr.mxu0 0.0
  %294 = vmatpush1.msra.mxu0 0.0
  %295 = vmatprep.subr.mxu0 0.0
  %296 = vmatpush1.msra.mxu0 0.0
  %297 = vmatprep.subr.mxu0 0.0
  %298 = vmatpush1.msra.mxu0 0.0
  %299 = vmatprep.subr.mxu0 0.0
  %300 = vmatpush1.msra.mxu0 0.0
  %301 = vmatprep.subr.mxu0 0.0
  %302 = vmatpush1.msra.mxu0 0.0
  %303 = vmatprep.subr.mxu0 0.0
  %304 = vmatpush1.msra.mxu0 0.0
  %305 = vmatprep.subr.mxu0 0.0
  %306 = vmatpush1.msra.mxu0 0.0
  %307 = vmatprep.subr.mxu0 0.0
  %308 = vmatpush1.msra.mxu0 0.0
  %309 = vmatprep.subr.mxu0 0.0
  %310 = vmatpush1.msra.mxu0 0.0
  %311 = vmatprep.subr.mxu0 0.0
  %312 = vmatpush1.msra.mxu0 %v281
  %313 = vmatprep.subr.mxu0 0.0
  %314 = vmatpush1.msra.mxu0 %v26
  %315 = vmatprep.subr.mxu0 0.0
  %316 = vmatpush2.msra.mxu0 0.0
  %317 = vmatprep.subr.mxu0 0.0
  %318 = vmatpush2.msra.mxu0 0.0
  %319 = vmatprep.subr.mxu0 0.0
  %320 = vmatpush2.msra.mxu0 0.0
  %321 = vmatprep.subr.mxu0 0.0
  %322 = vmatpush2.msra.mxu0 0.0
  %323 = vmatprep.subr.mxu0 0.0
  %324 = vmatpush2.msra.mxu0 0.0
  %325 = vmatprep.subr.mxu0 0.0
  %326 = vmatpush2.msra.mxu0 0.0
  %327 = vmatprep.subr.mxu0 0.0
  %328 = vmatpush2.msra.mxu0 0.0
  %329 = vmatprep.subr.mxu0 0.0
  %330 = vmatpush2.msra.mxu0 0.0
  %331 = vmatprep.subr.mxu0 0.0
  %332 = vmatpush2.msra.mxu0 0.0
  %333 = vmatprep.subr.mxu0 0.0
  %334 = vmatpush2.msra.mxu0 0.0
  %335 = vmatprep.subr.mxu0 0.0
  %336 = vmatpush2.msra.mxu0 0.0
  %337 = vmatprep.subr.mxu0 0.0
  %338 = vmatpush2.msra.mxu0 0.0
  %339 = vmatprep.subr.mxu0 0.0
  %340 = vmatpush2.msra.mxu0 0.0
  %341 = vmatprep.subr.mxu0 0.0
  %342 = vmatpush2.msra.mxu0 0.0
  %343 = vmatprep.subr.mxu0 0.0
  %344 = vmatpush2.msra.mxu0 0.0
  %345 = vmatprep.subr.mxu0 0.0
  %346 = vmatpush2.msra.mxu0 0.0
  %347 = vmatprep.mubr.f32.mxu0 0.0
  %348 = vmatmul.mubr.f32.gmra.mxu0 %v277
  %v349 = vpop.f32.mrf.mxu0
  %v350 = vadd.f32 %v274, %v349
  %v351 = vpop.f32.mrf.mxu0
  %352 = vdwg.mxu0
  %354 = vrot.lane.b32.xlu0 %v350, 118
  %v355 = vpop.permute.xlu0 %354
  %v356 = vsel %vm275, %v350, 0
  %v358 = vsel %vm275, %v355, 0
  %360 = vmatprep.subr.mxu0 0.0
  %361 = vmatpush1.xpose.msra.mxu0 0.0
  %362 = vmatprep.subr.mxu0 0.0
  %363 = vmatpush1.xpose.msra.mxu0 0.0
  %364 = vmatprep.subr.mxu0 0.0
  %365 = vmatpush1.xpose.msra.mxu0 0.0
  %366 = vmatprep.subr.mxu0 0.0
  %367 = vmatpush1.xpose.msra.mxu0 0.0
  %368 = vmatprep.subr.mxu0 0.0
  %369 = vmatpush1.xpose.msra.mxu0 0.0
  %370 = vmatprep.subr.mxu0 0.0
  %371 = vmatpush1.xpose.msra.mxu0 0.0
  %372 = vmatprep.subr.mxu0 0.0
  %373 = vmatpush1.xpose.msra.mxu0 0.0
  %374 = vmatprep.subr.mxu0 0.0
  %375 = vmatpush1.xpose.msra.mxu0 0.0
  %376 = vmatprep.subr.mxu0 0.0
  %377 = vmatpush1.xpose.msra.mxu0 0.0
  %378 = vmatprep.subr.mxu0 0.0
  %379 = vmatpush1.xpose.msra.mxu0 0.0
  %380 = vmatprep.subr.mxu0 0.0
  %381 = vmatpush1.xpose.msra.mxu0 0.0
  %382 = vmatprep.subr.mxu0 0.0
  %383 = vmatpush1.xpose.msra.mxu0 0.0
  %384 = vmatprep.subr.mxu0 0.0
  %385 = vmatpush1.xpose.msra.mxu0 0.0
  %386 = vmatprep.subr.mxu0 0.0
  %387 = vmatpush1.xpose.msra.mxu0 0.0
  %388 = vmatprep.subr.mxu0 0.0
  %389 = vmatpush1.xpose.msra.mxu0 0.0
  %390 = vmatprep.subr.mxu0 0.0
  %391 = vmatpush1.xpose.msra.mxu0 %v358
  %392 = vmatprep.subr.mxu0 0.0
  %393 = vmatpush2.xpose.msra.mxu0 0.0
  %394 = vmatprep.subr.mxu0 0.0
  %395 = vmatpush2.xpose.msra.mxu0 0.0
  %396 = vmatprep.subr.mxu0 0.0
  %397 = vmatpush2.xpose.msra.mxu0 0.0
  %398 = vmatprep.subr.mxu0 0.0
  %399 = vmatpush2.xpose.msra.mxu0 0.0
  %400 = vmatprep.subr.mxu0 0.0
  %401 = vmatpush2.xpose.msra.mxu0 0.0
  %402 = vmatprep.subr.mxu0 0.0
  %403 = vmatpush2.xpose.msra.mxu0 0.0
  %404 = vmatprep.subr.mxu0 0.0
  %405 = vmatpush2.xpose.msra.mxu0 0.0
  %406 = vmatprep.subr.mxu0 0.0
  %407 = vmatpush2.xpose.msra.mxu0 0.0
  %408 = vmatprep.subr.mxu0 0.0
  %409 = vmatpush2.xpose.msra.mxu0 0.0
  %410 = vmatprep.subr.mxu0 0.0
  %411 = vmatpush2.xpose.msra.mxu0 0.0
  %412 = vmatprep.subr.mxu0 0.0
  %413 = vmatpush2.xpose.msra.mxu0 0.0
  %414 = vmatprep.subr.mxu0 0.0
  %415 = vmatpush2.xpose.msra.mxu0 0.0
  %416 = vmatprep.subr.mxu0 0.0
  %417 = vmatpush2.xpose.msra.mxu0 0.0
  %418 = vmatprep.subr.mxu0 0.0
  %419 = vmatpush2.xpose.msra.mxu0 0.0
  %420 = vmatprep.subr.mxu0 0.0
  %421 = vmatpush2.xpose.msra.mxu0 0.0
  %422 = vmatprep.subr.mxu0 0.0
  %423 = vmatpush2.xpose.msra.mxu0 0.0
  %424 = vmatprep.mubr.f32.mxu0 0.0
  %425 = vmatmul.mubr.f32.gmra.mxu0 %v356
  %v426 = vpop.f32.mrf.mxu0
  %v427 = vadd.f32 0.0, %v426
  %v428 = vpop.f32.mrf.mxu0
  %429 = vdwg.mxu0
  %vm430 = vcmask 64512
  %v431 = vsel %vm430, %v427, -inf
  %432 = vmax.xlane.f32.xlu0 %v431
  %v433 = vpop.xlane.xlu0 %432
  %v434 = vsub.f32 %v427, %v433
  %v435 = vmul.f32 %v434, 1.442695
  %v436 = vpow.pop %v435
  %v437 = vsel %vm430, %v436, 0.0
  %438 = vadd.xlane.f32.xlu0 %v437
  %v439 = vpop.xlane.xlu0 %438
  %v440 = vrcp.pop %v439
  %v441 = vmul.f32 %v436, %v440
  %v442 = vlaneseq
  %v443 = vshrl.u32 %v442, 7
  %v444 = vsub.s32 0, %v443
  %v445 = vrot.slane %v29, %v444
  %446 = vrot.lane.b32.xlu0 %v350, 108
  %v447 = vpop.permute.xlu0 %446
  %v450 = vsel %vm430, %v441, 0
  %452 = vmatprep.subr.mxu0 0.0
  %453 = vmatpush1.msra.mxu0 0.0
  %454 = vmatprep.subr.mxu0 0.0
  %455 = vmatpush1.msra.mxu0 0.0
  %456 = vmatprep.subr.mxu0 0.0
  %457 = vmatpush1.msra.mxu0 0.0
  %458 = vmatprep.subr.mxu0 0.0
  %459 = vmatpush1.msra.mxu0 0.0
  %460 = vmatprep.subr.mxu0 0.0
  %461 = vmatpush1.msra.mxu0 0.0
  %462 = vmatprep.subr.mxu0 0.0
  %463 = vmatpush1.msra.mxu0 0.0
  %464 = vmatprep.subr.mxu0 0.0
  %465 = vmatpush1.msra.mxu0 0.0
  %466 = vmatprep.subr.mxu0 0.0
  %467 = vmatpush1.msra.mxu0 0.0
  %468 = vmatprep.subr.mxu0 0.0
  %469 = vmatpush1.msra.mxu0 0.0
  %470 = vmatprep.subr.mxu0 0.0
  %471 = vmatpush1.msra.mxu0 0.0
  %472 = vmatprep.subr.mxu0 0.0
  %473 = vmatpush1.msra.mxu0 0.0
  %474 = vmatprep.subr.mxu0 0.0
  %475 = vmatpush1.msra.mxu0 0.0
  %476 = vmatprep.subr.mxu0 0.0
  %477 = vmatpush1.msra.mxu0 0.0
  %478 = vmatprep.subr.mxu0 0.0
  %479 = vmatpush1.msra.mxu0 0.0
  %480 = vmatprep.subr.mxu0 0.0
  %481 = vmatpush1.msra.mxu0 0.0
  %482 = vmatprep.subr.mxu0 0.0
  %483 = vmatpush1.msra.mxu0 %v447
  %484 = vmatprep.subr.mxu0 0.0
  %485 = vmatpush2.msra.mxu0 0.0
  %486 = vmatprep.subr.mxu0 0.0
  %487 = vmatpush2.msra.mxu0 0.0
  %488 = vmatprep.subr.mxu0 0.0
  %489 = vmatpush2.msra.mxu0 0.0
  %490 = vmatprep.subr.mxu0 0.0
  %491 = vmatpush2.msra.mxu0 0.0
  %492 = vmatprep.subr.mxu0 0.0
  %493 = vmatpush2.msra.mxu0 0.0
  %494 = vmatprep.subr.mxu0 0.0
  %495 = vmatpush2.msra.mxu0 0.0
  %496 = vmatprep.subr.mxu0 0.0
  %497 = vmatpush2.msra.mxu0 0.0
  %498 = vmatprep.subr.mxu0 0.0
  %499 = vmatpush2.msra.mxu0 0.0
  %500 = vmatprep.subr.mxu0 0.0
  %501 = vmatpush2.msra.mxu0 0.0
  %502 = vmatprep.subr.mxu0 0.0
  %503 = vmatpush2.msra.mxu0 0.0
  %504 = vmatprep.subr.mxu0 0.0
  %505 = vmatpush2.msra.mxu0 0.0
  %506 = vmatprep.subr.mxu0 0.0
  %507 = vmatpush2.msra.mxu0 0.0
  %508 = vmatprep.subr.mxu0 0.0
  %509 = vmatpush2.msra.mxu0 0.0
  %510 = vmatprep.subr.mxu0 0.0
  %511 = vmatpush2.msra.mxu0 0.0
  %512 = vmatprep.subr.mxu0 0.0
  %513 = vmatpush2.msra.mxu0 0.0
  %514 = vmatprep.subr.mxu0 0.0
  %515 = vmatpush2.msra.mxu0 0.0
  %516 = vmatprep.mubr.f32.mxu0 0.0
  %517 = vmatmul.mubr.f32.gmra.mxu0 %v450
  %v518 = vpop.f32.mrf.mxu0
  %v519 = vadd.f32 %v445, %v518
  %v520 = vpop.f32.mrf.mxu0
  %521 = vdwg.mxu0
  %v522 = vadd.f32 %v519, %v270
  %vm523 = vcmp.gt.f32.partialorder %v522, 0.0
  %v524 = vmul.f32 %v522, 0.1
  %v525 = vsel %vm523, %v522, %v524
  %526 = vst.msk [vmem:[%s5] sm:$0xff] %vm275, %v525
  // Predicated region
  $region22: #{medal_forward.1} parent=0 // pred_check
    _
  $region23: #{medal_forward.1} parent=0 // pred_check_branch
    %528 = sbr.rel (0) target = $region25
  $region24: #{medal_forward.1} parent=0 // pred_region
    _
  $region25: #{medal_forward.1} parent=0 // pred_fallthru
    _
  // Predicated region
  $region26: #{medal_forward.1} parent=0 // pred_check
    _
  $region27: #{medal_forward.1} parent=0 // pred_check_branch
    %530 = sbr.rel (0) target = $region29
  $region28: #{medal_forward.1} parent=0 // pred_region
    _
  $region29: #{medal_forward.1} parent=0 // pred_fallthru
    _

</llo_original>
